<compile_context>
chip_gen: v7x
topology: tpu7x:2x2x1
jax: 0.10.0
libtpu: 0.0.40
codegen_flags: <defaults>
</compile_context>

<pallas_src>
import jax
import jax.numpy as jnp
from jax.experimental import pallas as pl
from jax.experimental.pallas import tpu as pltpu


def _softmax_linear_kernel(x_ref, wt_ref, b_ref, o_ref):
    # x_ref : [TB, n_in]   (bf16)
    # wt_ref: [n_in, N_PAD] (bf16, padded columns are zero)
    # b_ref : [1, N_PAD]    (f32, padded entries are -1e30)
    # o_ref : [TB, N_PAD]   (output dtype)
    x = x_ref[...]
    wt = wt_ref[...]
    b = b_ref[...]

    # MXU matmul with f32 accumulation, bias add + softmax in f32.
    logits = jnp.dot(x, wt, preferred_element_type=jnp.float32) + b  # [TB, N_PAD]

    m = jnp.max(logits, axis=-1, keepdims=True)          # row max (padded cols are -1e30)
    e = jnp.exp(logits - m)                               # padded cols -> exp(-1e30) == 0
    s = jnp.sum(e, axis=-1, keepdims=True)
    o_ref[...] = (e * pl.reciprocal(s, approx=True)).astype(o_ref.dtype)


def softmax_model_forward(x, w, b, *, tb=512, compute_dtype=jnp.bfloat16):
    """Forward pass of SoftmaxModel.

    x: [B, n_in] float32
    w: [n_out, n_in] (PyTorch nn.Linear weight layout)
    b: [n_out]
    returns softmax(x @ w.T + b, axis=1) with shape [B, n_out].
    """
    B, n_in = x.shape
    n_out = w.shape[0]
    out_dtype = x.dtype
    LANE = 128

    # ---- Lane-dense feature padding: n_out -> multiple of 128 -------------
    n_pad = ((n_out + LANE - 1) // LANE) * LANE
    wt = jnp.zeros((n_in, n_pad), compute_dtype)
    wt = wt.at[:, :n_out].set(w.T.astype(compute_dtype))          # zero-padded cols
    b2 = jnp.full((1, n_pad), -1e30, jnp.float32)
    b2 = b2.at[0, :n_out].set(b.astype(jnp.float32))              # -1e30 padded bias

    # ---- Batch tiling: TB rows per grid step, B padded up to a multiple ---
    tb_eff = min(tb, ((B + 7) // 8) * 8)                          # sublane-aligned tile
    b_pad = ((B + tb_eff - 1) // tb_eff) * tb_eff
    xp = x.astype(compute_dtype)
    if b_pad != B:
        xp = jnp.pad(xp, ((0, b_pad - B), (0, 0)))
    grid = (b_pad // tb_eff,)

    out = pl.pallas_call(
        _softmax_linear_kernel,
        out_shape=jax.ShapeDtypeStruct((b_pad, n_pad), out_dtype),
        grid=grid,
        in_specs=[
            pl.BlockSpec((tb_eff, n_in), lambda i: (i, 0)),       # x tile marches over batch
            pl.BlockSpec((n_in, n_pad), lambda i: (0, 0)),        # weight stays resident
            pl.BlockSpec((1, n_pad), lambda i: (0, 0)),           # bias stays resident
        ],
        out_specs=pl.BlockSpec((tb_eff, n_pad), lambda i: (i, 0)),
        compiler_params=pltpu.CompilerParams(
            dimension_semantics=("parallel",),                    # megacore sharding on v7x
        ),
    )(xp, wt, b2)

    return out[:B, :n_out]


if __name__ == "__main__":
    # Shapes consistent with SoftmaxModel.forward: x is [batch, n_in].
    B, n_in, n_out = 8, 32, 16

    key = jax.random.PRNGKey(0)
    kx, kw, kb = jax.random.split(key, 3)

    # Deterministic PyTorch-style Linear init: U(-1/sqrt(n_in), 1/sqrt(n_in)).
    bound = 1.0 / jnp.sqrt(jnp.float32(n_in))
    w = jax.random.uniform(kw, (n_out, n_in), jnp.float32, -bound, bound)
    b = jax.random.uniform(kb, (n_out,), jnp.float32, -bound, bound)
    x = jax.random.normal(kx, (B, n_in), jnp.float32)

    out = softmax_model_forward(x, w, b)
    out = jax.block_until_ready(out)

    # Reference in plain JAX (f32 path).  Tolerances loosened for bf16 matmul
    # inputs + approx reciprocal (softmax outputs are O(1/n_out)).
    ref = jax.nn.softmax(x @ w.T + b, axis=1)
    assert out.shape == (B, n_out)
    assert jnp.allclose(out, ref, atol=1e-2, rtol=1e-2)
    assert jnp.allclose(jnp.sum(out, axis=1), 1.0, atol=5e-3)

    # Second small check exercising the multi-tile + padded-batch path
    # (B not a multiple of the tile, grid > 1).
    B2 = 260
    x2 = jax.random.normal(kx, (B2, n_in), jnp.float32)
    out2 = jax.block_until_ready(softmax_model_forward(x2, w, b, tb=128))
    ref2 = jax.nn.softmax(x2 @ w.T + b, axis=1)
    assert out2.shape == (B2, n_out)
    assert jnp.allclose(out2, ref2, atol=1e-2, rtol=1e-2)
    assert jnp.allclose(jnp.sum(out2, axis=1), 1.0, atol=5e-3)

    print("KERNEL_OK")
</pallas_src>

<mosaic_0001>
module attributes {stable_mosaic.version = 11 : i64} {
  func.func @_softmax_linear_kernel(%arg0: i32, %arg1: memref<8x32xbf16, #tpu.memory_space<vmem>>, %arg2: memref<32x128xbf16, #tpu.memory_space<vmem>>, %arg3: memref<1x128xf32, #tpu.memory_space<vmem>>, %arg4: memref<8x128xf32, #tpu.memory_space<vmem>>) attributes {dimension_semantics = [#tpu.dimension_semantics<parallel>], iteration_bounds = array<i64: 1>, scalar_prefetch = 0 : i64, scratch_operands = 0 : i64, tpu.core_type = #tpu.core_type<tc>, window_params = [{transform_indices = @transform_0, window_bounds = array<i64: 8, 32>}, {pipeline_mode = #tpu.pipeline_mode<synchronous>, transform_indices = @transform_1, window_bounds = array<i64: 32, 128>}, {pipeline_mode = #tpu.pipeline_mode<synchronous>, transform_indices = @transform_2, window_bounds = array<i64: 1, 128>}, {transform_indices = @transform_3, window_bounds = array<i64: 8, 128>}]} {
    %c0 = arith.constant 0 : index
    %c0_0 = arith.constant 0 : index
    %0 = vector.load %arg1[%c0, %c0_0] : memref<8x32xbf16, #tpu.memory_space<vmem>>, vector<8x32xbf16>
    %c0_1 = arith.constant 0 : index
    %c0_2 = arith.constant 0 : index
    %1 = vector.load %arg2[%c0_1, %c0_2] : memref<32x128xbf16, #tpu.memory_space<vmem>>, vector<32x128xbf16>
    %c0_3 = arith.constant 0 : index
    %c0_4 = arith.constant 0 : index
    %2 = vector.load %arg3[%c0_3, %c0_4] : memref<1x128xf32, #tpu.memory_space<vmem>>, vector<1x128xf32>
    %cst = arith.constant dense<0.000000e+00> : vector<8x128xf32>
    %3 = tpu.matmul %0, %1, %cst {dimension_numbers = #tpu.dot_dimension_numbers<[1], [0], [0], [1], [0, 0, 1, 1], [], []>} : vector<8x32xbf16>, vector<32x128xbf16>, vector<8x128xf32> -> vector<8x128xf32>
    %4 = vector.broadcast %2 : vector<1x128xf32> to vector<8x128xf32>
    %5 = arith.addf %3, %4 : vector<8x128xf32>
    %cst_5 = arith.constant dense<0xFF800000> : vector<8xf32>
    %6 = vector.multi_reduction <maximumf>, %5, %cst_5 [1] : vector<8x128xf32> to vector<8xf32>
    %7 = vector.shape_cast %6 : vector<8xf32> to vector<8x1xf32>
    %8 = vector.broadcast %7 : vector<8x1xf32> to vector<8x128xf32>
    %9 = arith.subf %5, %8 : vector<8x128xf32>
    %10 = math.exp %9 : vector<8x128xf32>
    %cst_6 = arith.constant dense<0.000000e+00> : vector<8xf32>
    %11 = vector.multi_reduction <add>, %10, %cst_6 [1] : vector<8x128xf32> to vector<8xf32>
    %12 = vector.shape_cast %11 : vector<8xf32> to vector<8x1xf32>
    %13 = tpu.reciprocal %12 {approx = true} : vector<8x1xf32> -> vector<8x1xf32>
    %14 = vector.broadcast %13 : vector<8x1xf32> to vector<8x128xf32>
    %15 = arith.mulf %10, %14 : vector<8x128xf32>
    %c0_7 = arith.constant 0 : index
    %c0_8 = arith.constant 0 : index
    %16 = vector.load %arg4[%c0_7, %c0_8] : memref<8x128xf32, #tpu.memory_space<vmem>>, vector<8x128xf32>
    tpu.vector_store %arg4[%c0_7, %c0_8], %15 {strides = array<i32>} : memref<8x128xf32, #tpu.memory_space<vmem>>, vector<8x128xf32>,
    return
  }
  func.func @transform_0(%arg0: i32) -> (i32, i32) {
    %c0_i32 = arith.constant 0 : i32
    %c0_i32_0 = arith.constant 0 : i32
    return %arg0, %c0_i32 : i32, i32
  }
  func.func @transform_1(%arg0: i32) -> (i32, i32) {
    %c0_i32 = arith.constant 0 : i32
    %c0_i32_0 = arith.constant 0 : i32
    %c0_i32_1 = arith.constant 0 : i32
    return %c0_i32, %c0_i32_0 : i32, i32
  }
  func.func @transform_2(%arg0: i32) -> (i32, i32) {
    %c0_i32 = arith.constant 0 : i32
    %c0_i32_0 = arith.constant 0 : i32
    %c0_i32_1 = arith.constant 0 : i32
    return %c0_i32, %c0_i32_0 : i32, i32
  }
  func.func @transform_3(%arg0: i32) -> (i32, i32) {
    %c0_i32 = arith.constant 0 : i32
    %c0_i32_0 = arith.constant 0 : i32
    return %arg0, %c0_i32 : i32, i32
  }
}

</mosaic_0001>

<llo_original>
// kernel: tpu_custom_call.1
$region0: #{tpu_custom_call.1}
  #allocation0 [shape = 'u32[]', space=smem, size = 0x4, offset = 0x4, fixed_abs, tag = 'smem constant byte address 0x4 - core index']
  #allocation1 [shape = 'u32[144,128]{1,0:T(1,128)}', space=vmem, size = 0x12000, scoped, tag = 'internal scratch']
  %s0 = inlined_call_operand.hbm [shape: bf16[8,32], index: 0, kind: input, shape index: {}]
  %s1 = inlined_call_operand.hbm [shape: bf16[32,128], index: 1, kind: input, shape index: {}]
  %s2 = inlined_call_operand.vmem [shape: f32[1,128], index: 2, kind: input, shape index: {}]
  %s3 = inlined_call_operand.hbm [shape: f32[8,128], index: 3, kind: output, shape index: {}]
  %s4 = sld [smem:[#allocation0]]
  $region30: #{tpu_custom_call.1} parent=0
    _
  %s6 = ssub.s32 1, %s4
  %s7 = scalar_select 0, %s6, %s4
  $region1: #{tpu_custom_call.1} parent=0
    #allocation2 [shape = 'u8[2048]{0}', space=vmem, size = 0x800, scoped, tag = 'input window, operand 0, single buffered']
    #allocation3 [shape = 's32[1]{0}', space=sflag, size = 0x4, scoped, tag = 'scoped memory for tpu_custom_call.1']
    #allocation4 [shape = 's32[1]{0}', space=sflag, size = 0x4, scoped, tag = 'scoped memory for tpu_custom_call.1']
    #allocation5 [shape = 'u8[8192]{0}', space=vmem, size = 0x2000, scoped, tag = 'input window, operand 1, single buffered']
    #allocation6 [shape = 's32[1]{0}', space=sflag, size = 0x4, scoped, tag = 'scoped memory for tpu_custom_call.1']
    #allocation7 [shape = 'u8[4096]{0}', space=vmem, size = 0x1000, scoped, tag = 'output window, operand 0, single buffered']
    %8 = vsyncpa [#allocation3], 0
    %9 = vsyncpa [#allocation6], 0
    %10 = vsyncpa [#allocation4], 0
    // Predicated region
    $region2: #{tpu_custom_call.1} parent=1 // pred_check
      _
    $region3: #{tpu_custom_call.1} parent=1 // pred_check_branch
      %12 = sbr.rel (0) target = $region5
    $region4: #{tpu_custom_call.1} parent=1 // pred_region
      %s14 = ssub.s32 64, 64
      %15 = vsyncadd [#allocation3], %s14
      %s17 = sshll.u32 [#allocation2], 4
      %s18 = int_to_ptr.vmem [resolvable:$true] %s17
      %20 = dma.hbm_to_vmem [thread:$0]  %s0, 64, %s18, [#allocation3]
    $region5: #{tpu_custom_call.1} parent=1 // pred_fallthru
      _
    // Predicated region
    $region6: #{tpu_custom_call.1} parent=1 // pred_check
      _
    $region7: #{tpu_custom_call.1} parent=1 // pred_check_branch
      %22 = sbr.rel (0) target = $region9
    $region8: #{tpu_custom_call.1} parent=1 // pred_region
      %s24 = ssub.s32 256, 256
      %25 = vsyncadd [#allocation6], %s24
      %s26 = sshll.u32 [#allocation5], 4
      %s27 = int_to_ptr.vmem [resolvable:$true] %s26
      %32 = dma.hbm_to_vmem [thread:$0]  %s1, 256, %s27, [#allocation6], 64, 64, 4
    $region9: #{tpu_custom_call.1} parent=1 // pred_fallthru
      _
    // Predicated region
    $region10: #{tpu_custom_call.1} parent=1 // pred_check
      _
    $region11: #{tpu_custom_call.1} parent=1 // pred_check_branch
      %34 = sbr.rel (0) target = $region13
    $region12: #{tpu_custom_call.1} parent=1 // pred_region
      _
    $region13: #{tpu_custom_call.1} parent=1 // pred_fallthru
      _
    // Predicated region
    $region14: #{tpu_custom_call.1} parent=1 // pred_check
      _
    $region15: #{tpu_custom_call.1} parent=1 // pred_check_branch
      %36 = sbr.rel (0) target = $region17
    $region16: #{tpu_custom_call.1} parent=1 // pred_region
      %37 = dma.done [#allocation3], 64
    $region17: #{tpu_custom_call.1} parent=1 // pred_fallthru
      _
    // Predicated region
    $region18: #{tpu_custom_call.1} parent=1 // pred_check
      _
    $region19: #{tpu_custom_call.1} parent=1 // pred_check_branch
      %39 = sbr.rel (0) target = $region21
    $region20: #{tpu_custom_call.1} parent=1 // pred_region
      %40 = dma.done [#allocation6], 256
    $region21: #{tpu_custom_call.1} parent=1 // pred_fallthru
      _
    %v42 = vld [vmem:[#allocation2] sm:$0xf]
    %v43 = vld [vmem:[#allocation5] sm:$0xf]
    %v44 = vld [vmem:[#allocation5 + $0x4] sm:$0xf]
    %v45 = vld [vmem:[#allocation5 + $0x8] sm:$0xf]
    %v46 = vld [vmem:[#allocation5 + $0xc] sm:$0xf]
    %v47 = vld [vmem:[%s2] sm:$0x1]
    %v49 = vlaneseq
    %v50 = vshrl.u32 %v49, 7
    %v51 = vsub.s32 0, %v50
    %v52 = vrot.slane %v47, %v51
    %v58 = vunpack.c.l.b16 %v43
    %v59 = vunpack.c.l.b16 %v44
    %v60 = vunpack.c.l.b16 %v45
    %v61 = vunpack.c.l.b16 %v46
    %v62 = vpack.c.b16 %v59, %v58
    %v63 = vpack.c.b16 %v61, %v60
    %vm66 = vcmask 261120
    %v68 = vsel %vm66, %v42, 0
    %70 = vmatprep.subr.bf16.mxu0 0
    %71 = vmatpush1.bf16.msra.mxu0 %v62
    %72 = vmatprep.subr.bf16.mxu0 0
    %73 = vmatpush1.bf16.msra.mxu0 %v63
    %74 = vmatprep.subr.bf16.mxu0 0
    %75 = vmatpush1.bf16.msra.mxu0 0
    %76 = vmatprep.subr.bf16.mxu0 0
    %77 = vmatpush1.bf16.msra.mxu0 0
    %78 = vmatprep.subr.bf16.mxu0 0
    %79 = vmatpush1.bf16.msra.mxu0 0
    %80 = vmatprep.subr.bf16.mxu0 0
    %81 = vmatpush1.bf16.msra.mxu0 0
    %82 = vmatprep.subr.bf16.mxu0 0
    %83 = vmatpush1.bf16.msra.mxu0 0
    %84 = vmatprep.subr.bf16.mxu0 0
    %85 = vmatpush1.bf16.msra.mxu0 0
    %86 = vmatprep.subr.bf16.mxu0 0
    %87 = vmatpush1.bf16.msra.mxu0 0
    %88 = vmatprep.subr.bf16.mxu0 0
    %89 = vmatpush1.bf16.msra.mxu0 0
    %90 = vmatprep.subr.bf16.mxu0 0
    %91 = vmatpush1.bf16.msra.mxu0 0
    %92 = vmatprep.subr.bf16.mxu0 0
    %93 = vmatpush1.bf16.msra.mxu0 0
    %94 = vmatprep.subr.bf16.mxu0 0
    %95 = vmatpush1.bf16.msra.mxu0 0
    %96 = vmatprep.subr.bf16.mxu0 0
    %97 = vmatpush1.bf16.msra.mxu0 0
    %98 = vmatprep.subr.bf16.mxu0 0
    %99 = vmatpush1.bf16.msra.mxu0 0
    %100 = vmatprep.subr.bf16.mxu0 0
    %101 = vmatpush1.bf16.msra.mxu0 0
    %102 = vmatprep.mubr.bf16.mxu0 0
    %103 = vmatmul.mubr.bf16.gmra.mrb[0].mxu0 %v68
    %v104 = vpop.f32.mrb[0].mxu0
    %v105 = vadd.f32 %v52, %v104
    %v106 = vpop.f32.mrb[0].mxu0
    %v107 = vpop.f32.mrb[0].mxu0
    %v108 = vpop.f32.mrb[0].mxu0
    %109 = vdwg.mxu0
    %110 = vmax.xlane.f32.xlu0 %v105
    %v111 = vpop.xlane.xlu0 %110
    %v112 = vsub.f32 %v105, %v111
    %v113 = vmul.f32 %v112, 1.442695
    %v114 = vpow.pop %v113
    %115 = vadd.xlane.f32.xlu0 %v114
    %v116 = vpop.xlane.xlu0 %115
    %v117 = vrcp.pop %v116
    %v118 = vmul.f32 %v114, %v117
    %119 = vst [vmem:[#allocation7] sm:$0xff] %v118
    // Predicated region
    $region22: #{tpu_custom_call.1} parent=1 // pred_check
      _
    $region23: #{tpu_custom_call.1} parent=1 // pred_check_branch
      %121 = sbr.rel (0) target = $region25
    $region24: #{tpu_custom_call.1} parent=1 // pred_region
      %s123 = ssub.s32 128, 128
      %124 = vsyncadd [#allocation4], %s123
      %s126 = sshll.u32 [#allocation7], 4
      %s127 = int_to_ptr.vmem [resolvable:$true] %s126
      %129 = dma.vmem_to_hbm [thread:$0]  %s127, 128, %s3, [#allocation4]
    $region25: #{tpu_custom_call.1} parent=1 // pred_fallthru
      _
    // Predicated region
    $region26: #{tpu_custom_call.1} parent=1 // pred_check
      _
    $region27: #{tpu_custom_call.1} parent=1 // pred_check_branch
      %131 = sbr.rel (0) target = $region29
    $region28: #{tpu_custom_call.1} parent=1 // pred_region
      %132 = dma.done [#allocation4], 128
    $region29: #{tpu_custom_call.1} parent=1 // pred_fallthru
      _
    %133 = vsyncpa [#allocation3], 1
    %134 = vsyncpa [#allocation6], 1
    %135 = vsyncpa [#allocation4], 1

</llo_original>
